<compile_context>
chip_gen: v6e
topology: v6e:2x2x1
jax: 0.10.0
libtpu: 0.0.40
codegen_flags: <defaults>
</compile_context>

<pallas_src>
import jax
import jax.numpy as jnp
from jax.experimental import pallas as pl
from jax.experimental.pallas import tpu as pltpu


NEG_BIG = -1e30  # drives padded logits to ~-inf without inf arithmetic


def make_mlp_kernel(num_layers: int):
    """Fused MLP kernel.

    Kernel argument order: (x_ref, w0_ref, b0_ref, w1_ref, b1_ref, ..., o_ref).
    x and weights are bf16; biases / accumulation / softmax math are f32.
    """

    def kernel(x_ref, *refs):
        o_ref = refs[-1]
        wb_refs = refs[:-1]

        h = x_ref[...]  # bf16 (tile_b, D0)
        for i in range(num_layers):
            w = wb_refs[2 * i][...]       # bf16 (in_i, out_i)
            b = wb_refs[2 * i + 1][...]   # f32  (1, out_i)
            acc = jnp.dot(h, w, preferred_element_type=jnp.float32) + b
            # nn.Dropout(p=0.2): identity at inference time.
            if i < num_layers - 1:
                # ReLU in f32 on the VPU, then back to bf16 for the next MXU op.
                h = jnp.maximum(acc, 0.0).astype(jnp.bfloat16)
            else:
                # LogSoftmax(dim=1) over the (lane-dense, padded) last axis.
                # Pad columns carry ~-1e30 so exp() underflows to exactly 0.
                m = jnp.max(acc, axis=-1, keepdims=True)
                z = acc - m
                lse = jnp.log(jnp.sum(jnp.exp(z), axis=-1, keepdims=True))
                o_ref[...] = (z - lse).astype(o_ref.dtype)

    return kernel


def mlp_forward(x, params, *, max_tile_b=512):
    """Run the fused MLP kernel.

    x:      (B, D0) float32.
    params: list of (W, b) with W: (in_i, out_i), b: (out_i,)  (f32).
    Returns (B, out_dim) float32 log-probabilities.
    """
    B, D0 = x.shape
    num_layers = len(params)
    out_dim = params[-1][0].shape[1]
    # Lane-dense output width (multiple of 128) -> unmasked stores.
    out_pad = pl.cdiv(out_dim, 128) * 128

    # ---- batch tiling ----------------------------------------------------
    if B <= max_tile_b:
        # Single un-gridded block: no pipeline bubbles, no per-step overhead.
        tile_b = B
    else:
        tile_b = max_tile_b  # 512: multiple of 256 (v6e/v7x) and 128 (v5e)
    n_tiles = pl.cdiv(B, tile_b)
    b_pad = n_tiles * tile_b
    if b_pad != B:
        x = jnp.pad(x, ((0, b_pad - B), (0, 0)))

    # ---- parameter packing -----------------------------------------------
    x_bf16 = x.astype(jnp.bfloat16)

    flat_args = []
    in_specs = [pl.BlockSpec((tile_b, D0), lambda i: (i, 0))]
    for li, (w, b) in enumerate(params):
        if li == num_layers - 1 and out_pad != out_dim:
            # Zero-pad weight columns; big-negative bias on pad columns so the
            # padded logits vanish from the log-sum-exp.
            w = jnp.pad(w, ((0, 0), (0, out_pad - out_dim)))
            b = jnp.concatenate(
                [b, jnp.full((out_pad - out_dim,), NEG_BIG, dtype=b.dtype)])
        w_bf16 = w.astype(jnp.bfloat16)
        b2d = b.astype(jnp.float32).reshape(1, -1)
        flat_args += [w_bf16, b2d]
        # Constant index map -> weights/biases stay resident in VMEM.
        in_specs += [
            pl.BlockSpec(w_bf16.shape, lambda i: (0, 0)),
            pl.BlockSpec(b2d.shape, lambda i: (0, 0)),
        ]

    out_specs = pl.BlockSpec((tile_b, out_pad), lambda i: (i, 0))

    # VMEM budget (double-buffered): 2*(tile_b*D0*2) for x + 2*(tile_b*out_pad*4)
    # for the output + ~27 KB of weights; at tile_b=512 this is < 1 MiB, far
    # under the default scoped limit on all of v5e/v6e/v7x.
    out_full = pl.pallas_call(
        make_mlp_kernel(num_layers),
        out_shape=jax.ShapeDtypeStruct((b_pad, out_pad), jnp.float32),
        grid=(n_tiles,),
        in_specs=in_specs,
        out_specs=out_specs,
        compiler_params=pltpu.CompilerParams(
            dimension_semantics=("parallel",)
        ),
    )(x_bf16, *flat_args)

    return out_full[:B, :out_dim]


def init_params(key, layers):
    """Deterministic PyTorch-Linear-style init: U(-1/sqrt(fan_in), 1/sqrt(fan_in))."""
    params = []
    for (fan_in, fan_out) in layers:
        key, kw, kb = jax.random.split(key, 3)
        bound = 1.0 / jnp.sqrt(float(fan_in))
        # Stored directly as (in, out) == W_torch.T
        w = jax.random.uniform(kw, (fan_in, fan_out), jnp.float32, -bound, bound)
        b = jax.random.uniform(kb, (fan_out,), jnp.float32, -bound, bound)
        params.append((w, b))
    return params


def mlp_reference(x, params):
    """Pure-JAX reference of the same forward pass (eval-mode dropout),
    mirroring the kernel's bf16-matmul / f32-accumulate numerics."""
    h = x.astype(jnp.bfloat16)
    n = len(params)
    for i, (w, b) in enumerate(params):
        acc = jnp.dot(h, w.astype(jnp.bfloat16),
                      preferred_element_type=jnp.float32) + b
        if i < n - 1:
            h = jnp.maximum(acc, 0.0).astype(jnp.bfloat16)
        else:
            return jax.nn.log_softmax(acc, axis=1)


if __name__ == "__main__":
    # config.layers equivalent: [[32, 64], [64, 64], [64, 10]]
    layers = [(32, 64), (64, 64), (64, 10)]

    key = jax.random.PRNGKey(0)
    key, kx_small, kx_big = jax.random.split(key, 3)
    params = init_params(key, layers)

    # Small batch: single un-gridded block.
    batch_small = 16
    x_small = jax.random.normal(kx_small, (batch_small, layers[0][0]), jnp.float32)
    out_small = jax.block_until_ready(mlp_forward(x_small, params))
    ref_small = mlp_reference(x_small, params)
    assert out_small.shape == (batch_small, layers[-1][1])
    assert jnp.allclose(out_small, ref_small, atol=2e-3, rtol=2e-3), \
        "mismatch vs reference (small batch)"

    # Larger batch: 2 parallel grid steps of tile_b=512 (exercises tiling
    # and feeds both TensorCores on v7x).
    batch_big = 1024
    x_big = jax.random.normal(kx_big, (batch_big, layers[0][0]), jnp.float32)
    out_big = jax.block_until_ready(mlp_forward(x_big, params))
    ref_big = mlp_reference(x_big, params)
    assert out_big.shape == (batch_big, layers[-1][1])
    assert jnp.allclose(out_big, ref_big, atol=2e-3, rtol=2e-3), \
        "mismatch vs reference (big batch)"

    print("KERNEL_OK")
</pallas_src>

<mosaic_0001>
module attributes {stable_mosaic.version = 11 : i64} {
  func.func @kernel(%arg0: i32, %arg1: memref<16x32xbf16, #tpu.memory_space<vmem>>, %arg2: memref<32x64xbf16, #tpu.memory_space<vmem>>, %arg3: memref<1x64xf32, #tpu.memory_space<vmem>>, %arg4: memref<64x64xbf16, #tpu.memory_space<vmem>>, %arg5: memref<1x64xf32, #tpu.memory_space<vmem>>, %arg6: memref<64x128xbf16, #tpu.memory_space<vmem>>, %arg7: memref<1x128xf32, #tpu.memory_space<vmem>>, %arg8: memref<16x128xf32, #tpu.memory_space<vmem>>) attributes {dimension_semantics = [#tpu.dimension_semantics<parallel>], iteration_bounds = array<i64: 1>, scalar_prefetch = 0 : i64, scratch_operands = 0 : i64, tpu.core_type = #tpu.core_type<tc>, window_params = [{transform_indices = @transform_0, window_bounds = array<i64: 16, 32>}, {pipeline_mode = #tpu.pipeline_mode<synchronous>, transform_indices = @transform_1, window_bounds = array<i64: 32, 64>}, {pipeline_mode = #tpu.pipeline_mode<synchronous>, transform_indices = @transform_2, window_bounds = array<i64: 1, 64>}, {pipeline_mode = #tpu.pipeline_mode<synchronous>, transform_indices = @transform_3, window_bounds = array<i64: 64, 64>}, {pipeline_mode = #tpu.pipeline_mode<synchronous>, transform_indices = @transform_4, window_bounds = array<i64: 1, 64>}, {pipeline_mode = #tpu.pipeline_mode<synchronous>, transform_indices = @transform_5, window_bounds = array<i64: 64, 128>}, {pipeline_mode = #tpu.pipeline_mode<synchronous>, transform_indices = @transform_6, window_bounds = array<i64: 1, 128>}, {transform_indices = @transform_7, window_bounds = array<i64: 16, 128>}]} {
    %c0 = arith.constant 0 : index
    %c0_0 = arith.constant 0 : index
    %0 = vector.load %arg1[%c0, %c0_0] : memref<16x32xbf16, #tpu.memory_space<vmem>>, vector<16x32xbf16>
    %c0_1 = arith.constant 0 : index
    %c0_2 = arith.constant 0 : index
    %1 = vector.load %arg2[%c0_1, %c0_2] : memref<32x64xbf16, #tpu.memory_space<vmem>>, vector<32x64xbf16>
    %c0_3 = arith.constant 0 : index
    %c0_4 = arith.constant 0 : index
    %2 = vector.load %arg3[%c0_3, %c0_4] : memref<1x64xf32, #tpu.memory_space<vmem>>, vector<1x64xf32>
    %cst = arith.constant dense<0.000000e+00> : vector<16x64xf32>
    %3 = tpu.matmul %0, %1, %cst {dimension_numbers = #tpu.dot_dimension_numbers<[1], [0], [0], [1], [0, 0, 1, 1], [], []>} : vector<16x32xbf16>, vector<32x64xbf16>, vector<16x64xf32> -> vector<16x64xf32>
    %4 = vector.broadcast %2 : vector<1x64xf32> to vector<16x64xf32>
    %5 = arith.addf %3, %4 : vector<16x64xf32>
    %cst_5 = arith.constant 0.000000e+00 : f32
    %6 = vector.broadcast %cst_5 : f32 to vector<16x64xf32>
    %7 = arith.maximumf %5, %6 : vector<16x64xf32>
    %8 = arith.truncf %7 : vector<16x64xf32> to vector<16x64xbf16>
    %c0_6 = arith.constant 0 : index
    %c0_7 = arith.constant 0 : index
    %9 = vector.load %arg4[%c0_6, %c0_7] : memref<64x64xbf16, #tpu.memory_space<vmem>>, vector<64x64xbf16>
    %c0_8 = arith.constant 0 : index
    %c0_9 = arith.constant 0 : index
    %10 = vector.load %arg5[%c0_8, %c0_9] : memref<1x64xf32, #tpu.memory_space<vmem>>, vector<1x64xf32>
    %cst_10 = arith.constant dense<0.000000e+00> : vector<16x64xf32>
    %11 = tpu.matmul %8, %9, %cst_10 {dimension_numbers = #tpu.dot_dimension_numbers<[1], [0], [0], [1], [0, 0, 1, 1], [], []>} : vector<16x64xbf16>, vector<64x64xbf16>, vector<16x64xf32> -> vector<16x64xf32>
    %12 = vector.broadcast %10 : vector<1x64xf32> to vector<16x64xf32>
    %13 = arith.addf %11, %12 : vector<16x64xf32>
    %cst_11 = arith.constant 0.000000e+00 : f32
    %14 = vector.broadcast %cst_11 : f32 to vector<16x64xf32>
    %15 = arith.maximumf %13, %14 : vector<16x64xf32>
    %16 = arith.truncf %15 : vector<16x64xf32> to vector<16x64xbf16>
    %c0_12 = arith.constant 0 : index
    %c0_13 = arith.constant 0 : index
    %17 = vector.load %arg6[%c0_12, %c0_13] : memref<64x128xbf16, #tpu.memory_space<vmem>>, vector<64x128xbf16>
    %c0_14 = arith.constant 0 : index
    %c0_15 = arith.constant 0 : index
    %18 = vector.load %arg7[%c0_14, %c0_15] : memref<1x128xf32, #tpu.memory_space<vmem>>, vector<1x128xf32>
    %cst_16 = arith.constant dense<0.000000e+00> : vector<16x128xf32>
    %19 = tpu.matmul %16, %17, %cst_16 {dimension_numbers = #tpu.dot_dimension_numbers<[1], [0], [0], [1], [0, 0, 1, 1], [], []>} : vector<16x64xbf16>, vector<64x128xbf16>, vector<16x128xf32> -> vector<16x128xf32>
    %20 = vector.broadcast %18 : vector<1x128xf32> to vector<16x128xf32>
    %21 = arith.addf %19, %20 : vector<16x128xf32>
    %cst_17 = arith.constant dense<0xFF800000> : vector<16xf32>
    %22 = vector.multi_reduction <maximumf>, %21, %cst_17 [1] : vector<16x128xf32> to vector<16xf32>
    %23 = vector.shape_cast %22 : vector<16xf32> to vector<16x1xf32>
    %24 = vector.broadcast %23 : vector<16x1xf32> to vector<16x128xf32>
    %25 = arith.subf %21, %24 : vector<16x128xf32>
    %26 = math.exp %25 : vector<16x128xf32>
    %cst_18 = arith.constant dense<0.000000e+00> : vector<16xf32>
    %27 = vector.multi_reduction <add>, %26, %cst_18 [1] : vector<16x128xf32> to vector<16xf32>
    %28 = vector.shape_cast %27 : vector<16xf32> to vector<16x1xf32>
    %29 = math.log %28 : vector<16x1xf32>
    %30 = vector.broadcast %29 : vector<16x1xf32> to vector<16x128xf32>
    %31 = arith.subf %25, %30 : vector<16x128xf32>
    %c0_19 = arith.constant 0 : index
    %c0_20 = arith.constant 0 : index
    %32 = vector.load %arg8[%c0_19, %c0_20] : memref<16x128xf32, #tpu.memory_space<vmem>>, vector<16x128xf32>
    tpu.vector_store %arg8[%c0_19, %c0_20], %31 {strides = array<i32>} : memref<16x128xf32, #tpu.memory_space<vmem>>, vector<16x128xf32>,
    return
  }
  func.func @transform_0(%arg0: i32) -> (i32, i32) {
    %c0_i32 = arith.constant 0 : i32
    %c0_i32_0 = arith.constant 0 : i32
    return %arg0, %c0_i32 : i32, i32
  }
  func.func @transform_1(%arg0: i32) -> (i32, i32) {
    %c0_i32 = arith.constant 0 : i32
    %c0_i32_0 = arith.constant 0 : i32
    %c0_i32_1 = arith.constant 0 : i32
    return %c0_i32, %c0_i32_0 : i32, i32
  }
  func.func @transform_2(%arg0: i32) -> (i32, i32) {
    %c0_i32 = arith.constant 0 : i32
    %c0_i32_0 = arith.constant 0 : i32
    %c0_i32_1 = arith.constant 0 : i32
    return %c0_i32, %c0_i32_0 : i32, i32
  }
  func.func @transform_3(%arg0: i32) -> (i32, i32) {
    %c0_i32 = arith.constant 0 : i32
    %c0_i32_0 = arith.constant 0 : i32
    %c0_i32_1 = arith.constant 0 : i32
    return %c0_i32, %c0_i32_0 : i32, i32
  }
  func.func @transform_4(%arg0: i32) -> (i32, i32) {
    %c0_i32 = arith.constant 0 : i32
    %c0_i32_0 = arith.constant 0 : i32
    %c0_i32_1 = arith.constant 0 : i32
    return %c0_i32, %c0_i32_0 : i32, i32
  }
  func.func @transform_5(%arg0: i32) -> (i32, i32) {
    %c0_i32 = arith.constant 0 : i32
    %c0_i32_0 = arith.constant 0 : i32
    %c0_i32_1 = arith.constant 0 : i32
    return %c0_i32, %c0_i32_0 : i32, i32
  }
  func.func @transform_6(%arg0: i32) -> (i32, i32) {
    %c0_i32 = arith.constant 0 : i32
    %c0_i32_0 = arith.constant 0 : i32
    %c0_i32_1 = arith.constant 0 : i32
    return %c0_i32, %c0_i32_0 : i32, i32
  }
  func.func @transform_7(%arg0: i32) -> (i32, i32) {
    %c0_i32 = arith.constant 0 : i32
    %c0_i32_0 = arith.constant 0 : i32
    return %arg0, %c0_i32 : i32, i32
  }
}

</mosaic_0001>

<llo_original>
// kernel: tpu_custom_call.1
$region0: #{tpu_custom_call.1}
  #allocation0 [shape = 'u32[]', space=smem, size = 0x4, offset = 0x4, fixed_abs, tag = 'smem constant byte address 0x4 - core index']
  #allocation1 [shape = 'u32[144,128]{1,0:T(1,128)}', space=vmem, size = 0x12000, scoped, tag = 'internal scratch']
  %s0 = inlined_call_operand.hbm [shape: bf16[16,32], index: 0, kind: input, shape index: {}]
  %s1 = inlined_call_operand.hbm [shape: bf16[32,64], index: 1, kind: input, shape index: {}]
  %s2 = inlined_call_operand.vmem [shape: f32[1,64], index: 2, kind: input, shape index: {}]
  %s3 = inlined_call_operand.hbm [shape: bf16[64,64], index: 3, kind: input, shape index: {}]
  %s4 = inlined_call_operand.vmem [shape: f32[1,64], index: 4, kind: input, shape index: {}]
  %s5 = inlined_call_operand.hbm [shape: bf16[64,128], index: 5, kind: input, shape index: {}]
  %s6 = inlined_call_operand.vmem [shape: f32[1,128], index: 6, kind: input, shape index: {}]
  %s7 = inlined_call_operand.hbm [shape: f32[16,128], index: 7, kind: output, shape index: {}]
  %s8 = sld [smem:[#allocation0]]
  $region54: #{tpu_custom_call.1} parent=0
    _
  %s10 = ssub.s32 1, %s8
  %s11 = scalar_select 0, %s10, %s8
  $region1: #{tpu_custom_call.1} parent=0
    #allocation2 [shape = 'u8[4096]{0}', space=vmem, size = 0x1000, scoped, tag = 'input window, operand 0, single buffered']
    #allocation3 [shape = 's32[1]{0}', space=sflag, size = 0x4, scoped, tag = 'scoped memory for tpu_custom_call.1']
    #allocation4 [shape = 's32[1]{0}', space=sflag, size = 0x4, scoped, tag = 'scoped memory for tpu_custom_call.1']
    #allocation5 [shape = 'u8[8192]{0}', space=vmem, size = 0x2000, scoped, tag = 'input window, operand 1, single buffered']
    #allocation6 [shape = 's32[1]{0}', space=sflag, size = 0x4, scoped, tag = 'scoped memory for tpu_custom_call.1']
    #allocation7 [shape = 'u8[16384]{0}', space=vmem, size = 0x4000, scoped, tag = 'input window, operand 3, single buffered']
    #allocation8 [shape = 'u8[16384]{0}', space=vmem, size = 0x4000, scoped, tag = 'input window, operand 5, single buffered']
    #allocation9 [shape = 's32[1]{0}', space=sflag, size = 0x4, scoped, tag = 'scoped memory for tpu_custom_call.1']
    #allocation10 [shape = 'u8[8192]{0}', space=vmem, size = 0x2000, scoped, tag = 'output window, operand 0, single buffered']
    %12 = vsyncpa [#allocation3], 0
    %13 = vsyncpa [#allocation6], 0
    %14 = vsyncpa [#allocation9], 0
    %15 = vsyncpa [#allocation4], 0
    // Predicated region
    $region2: #{tpu_custom_call.1} parent=1 // pred_check
      _
    $region3: #{tpu_custom_call.1} parent=1 // pred_check_branch
      %17 = sbr.rel (0) target = $region5
    $region4: #{tpu_custom_call.1} parent=1 // pred_region
      %s19 = ssub.s32 128, 128
      %20 = vsyncadd [#allocation3], %s19
      %s21 = sshll.u32 [#allocation2], 4
      %s22 = int_to_ptr.vmem [resolvable:$true] %s21
      %27 = dma.hbm_to_vmem [thread:$0]  %s0, 128, %s22, [#allocation3], 64, 64, 4
    $region5: #{tpu_custom_call.1} parent=1 // pred_fallthru
      _
    // Predicated region
    $region6: #{tpu_custom_call.1} parent=1 // pred_check
      _
    $region7: #{tpu_custom_call.1} parent=1 // pred_check_branch
      %29 = sbr.rel (0) target = $region9
    $region8: #{tpu_custom_call.1} parent=1 // pred_region
      %s31 = ssub.s32 256, 256
      %32 = vsyncadd [#allocation6], %s31
      %s33 = sshll.u32 [#allocation5], 4
      %s34 = int_to_ptr.vmem [resolvable:$true] %s33
      %39 = dma.hbm_to_vmem [thread:$0]  %s1, 256, %s34, [#allocation6], 64, 64, 4
    $region9: #{tpu_custom_call.1} parent=1 // pred_fallthru
      _
    // Predicated region
    $region10: #{tpu_custom_call.1} parent=1 // pred_check
      _
    $region11: #{tpu_custom_call.1} parent=1 // pred_check_branch
      %41 = sbr.rel (0) target = $region13
    $region12: #{tpu_custom_call.1} parent=1 // pred_region
      _
    $region13: #{tpu_custom_call.1} parent=1 // pred_fallthru
      _
    // Predicated region
    $region14: #{tpu_custom_call.1} parent=1 // pred_check
      _
    $region15: #{tpu_custom_call.1} parent=1 // pred_check_branch
      %43 = sbr.rel (0) target = $region17
    $region16: #{tpu_custom_call.1} parent=1 // pred_region
      %s45 = ssub.s32 512, 512
      %46 = vsyncadd [#allocation6], %s45
      %s47 = sshll.u32 [#allocation7], 4
      %s48 = int_to_ptr.vmem [resolvable:$true] %s47
      %53 = dma.hbm_to_vmem [thread:$0]  %s3, 512, %s48, [#allocation6], 64, 64, 4
    $region17: #{tpu_custom_call.1} parent=1 // pred_fallthru
      _
    // Predicated region
    $region18: #{tpu_custom_call.1} parent=1 // pred_check
      _
    $region19: #{tpu_custom_call.1} parent=1 // pred_check_branch
      %55 = sbr.rel (0) target = $region21
    $region20: #{tpu_custom_call.1} parent=1 // pred_region
      _
    $region21: #{tpu_custom_call.1} parent=1 // pred_fallthru
      _
    // Predicated region
    $region22: #{tpu_custom_call.1} parent=1 // pred_check
      _
    $region23: #{tpu_custom_call.1} parent=1 // pred_check_branch
      %57 = sbr.rel (0) target = $region25
    $region24: #{tpu_custom_call.1} parent=1 // pred_region
      %s59 = ssub.s32 512, 512
      %60 = vsyncadd [#allocation9], %s59
      %s61 = sshll.u32 [#allocation8], 4
      %s62 = int_to_ptr.vmem [resolvable:$true] %s61
      %67 = dma.hbm_to_vmem [thread:$0]  %s5, 512, %s62, [#allocation9], 64, 64, 4
    $region25: #{tpu_custom_call.1} parent=1 // pred_fallthru
      _
    // Predicated region
    $region26: #{tpu_custom_call.1} parent=1 // pred_check
      _
    $region27: #{tpu_custom_call.1} parent=1 // pred_check_branch
      %69 = sbr.rel (0) target = $region29
    $region28: #{tpu_custom_call.1} parent=1 // pred_region
      _
    $region29: #{tpu_custom_call.1} parent=1 // pred_fallthru
      _
    // Predicated region
    $region30: #{tpu_custom_call.1} parent=1 // pred_check
      _
    $region31: #{tpu_custom_call.1} parent=1 // pred_check_branch
      %71 = sbr.rel (0) target = $region33
    $region32: #{tpu_custom_call.1} parent=1 // pred_region
      %72 = dma.done [#allocation3], 128
    $region33: #{tpu_custom_call.1} parent=1 // pred_fallthru
      _
    // Predicated region
    $region34: #{tpu_custom_call.1} parent=1 // pred_check
      _
    $region35: #{tpu_custom_call.1} parent=1 // pred_check_branch
      %74 = sbr.rel (0) target = $region37
    $region36: #{tpu_custom_call.1} parent=1 // pred_region
      %75 = dma.done [#allocation6], 256
    $region37: #{tpu_custom_call.1} parent=1 // pred_fallthru
      _
    // Predicated region
    $region38: #{tpu_custom_call.1} parent=1 // pred_check
      _
    $region39: #{tpu_custom_call.1} parent=1 // pred_check_branch
      %77 = sbr.rel (0) target = $region41
    $region40: #{tpu_custom_call.1} parent=1 // pred_region
      %78 = dma.done [#allocation6], 512
    $region41: #{tpu_custom_call.1} parent=1 // pred_fallthru
      _
    // Predicated region
    $region42: #{tpu_custom_call.1} parent=1 // pred_check
      _
    $region43: #{tpu_custom_call.1} parent=1 // pred_check_branch
      %80 = sbr.rel (0) target = $region45
    $region44: #{tpu_custom_call.1} parent=1 // pred_region
      %81 = dma.done [#allocation9], 512
    $region45: #{tpu_custom_call.1} parent=1 // pred_fallthru
      _
    %v83 = vld [vmem:[#allocation2] sm:$0xf]
    %v84 = vld [vmem:[#allocation2 + $0x4] sm:$0xf]
    %v85 = vld [vmem:[#allocation5] sm:$0xf]
    %v86 = vld [vmem:[#allocation5 + $0x4] sm:$0xf]
    %v87 = vld [vmem:[#allocation5 + $0x8] sm:$0xf]
    %v88 = vld [vmem:[#allocation5 + $0xc] sm:$0xf]
    %v89 = vld [vmem:[%s2] sm:$0x1]
    %v91 = vlaneseq
    %v92 = vshrl.u32 %v91, 7
    %v93 = vsub.s32 0, %v92
    %v94 = vrot.slane %v89, %v93
    %v98 = vunpack.c.l.b16 %v83
    %v99 = vunpack.c.l.b16 %v84
    %v100 = vpack.c.b16 %v99, %v98
    %v105 = vunpack.c.l.b16 %v85
    %v106 = vunpack.c.l.b16 %v86
    %v107 = vunpack.c.l.b16 %v87
    %v108 = vunpack.c.l.b16 %v88
    %v109 = vpack.c.b16 %v106, %v105
    %v110 = vpack.c.b16 %v108, %v107
    %vm113 = vcmask 261120
    %v115 = vsel %vm113, %v100, 0
    %117 = vmatprep.subr.bf16.mxu0 0
    %118 = vmatpush1.bf16.msra.mxu0 0
    %119 = vmatprep.subr.bf16.mxu0 0
    %120 = vmatpush1.bf16.msra.mxu0 0
    %121 = vmatprep.subr.bf16.mxu0 0
    %122 = vmatpush1.bf16.msra.mxu0 0
    %123 = vmatprep.subr.bf16.mxu0 0
    %124 = vmatpush1.bf16.msra.mxu0 0
    %125 = vmatprep.subr.bf16.mxu0 0
    %126 = vmatpush1.bf16.msra.mxu0 0
    %127 = vmatprep.subr.bf16.mxu0 0
    %128 = vmatpush1.bf16.msra.mxu0 0
    %129 = vmatprep.subr.bf16.mxu0 0
    %130 = vmatpush1.bf16.msra.mxu0 %v110
    %131 = vmatprep.subr.bf16.mxu0 0
    %132 = vmatpush1.bf16.msra.mxu0 %v109
    %133 = vmatprep.subr.bf16.mxu0 0
    %134 = vmatpush2.bf16.msra.mxu0 0
    %135 = vmatprep.subr.bf16.mxu0 0
    %136 = vmatpush2.bf16.msra.mxu0 0
    %137 = vmatprep.subr.bf16.mxu0 0
    %138 = vmatpush2.bf16.msra.mxu0 0
    %139 = vmatprep.subr.bf16.mxu0 0
    %140 = vmatpush2.bf16.msra.mxu0 0
    %141 = vmatprep.subr.bf16.mxu0 0
    %142 = vmatpush2.bf16.msra.mxu0 0
    %143 = vmatprep.subr.bf16.mxu0 0
    %144 = vmatpush2.bf16.msra.mxu0 0
    %145 = vmatprep.subr.bf16.mxu0 0
    %146 = vmatpush2.bf16.msra.mxu0 0
    %147 = vmatprep.subr.bf16.mxu0 0
    %148 = vmatpush2.bf16.msra.mxu0 0
    %149 = vmatprep.mubr.bf16.mxu0 0
    %150 = vmatmul.mubr.bf16.gmra.mxu0 %v115
    %v151 = vpop.f32.mrf.mxu0
    %v152 = vadd.f32 %v94, %v151
    %v153 = vpop.f32.mrf.mxu0
    %v154 = vpop.f32.mrf.mxu0
    %v155 = vadd.f32 %v94, %v154
    %v156 = vpop.f32.mrf.mxu0
    %157 = vdwg.mxu0
    %v158 = vmax.f32 %v152, 0.0
    %v159 = vmax.f32 %v155, 0.0
    %v160 = vpack.c.bf16 %v159, %v158
    %v161 = vld [vmem:[#allocation7] sm:$0xf]
    %v162 = vld [vmem:[#allocation7 + $0x4] sm:$0xf]
    %v163 = vld [vmem:[#allocation7 + $0x8] sm:$0xf]
    %v164 = vld [vmem:[#allocation7 + $0xc] sm:$0xf]
    %v165 = vld [vmem:[#allocation7 + $0x10] sm:$0xf]
    %v166 = vld [vmem:[#allocation7 + $0x14] sm:$0xf]
    %v167 = vld [vmem:[#allocation7 + $0x18] sm:$0xf]
    %v168 = vld [vmem:[#allocation7 + $0x1c] sm:$0xf]
    %v169 = vld [vmem:[%s4] sm:$0x1]
    %v171 = vlaneseq
    %v172 = vshrl.u32 %v171, 7
    %v173 = vsub.s32 0, %v172
    %v174 = vrot.slane %v169, %v173
    %v184 = vunpack.c.l.b16 %v161
    %v185 = vunpack.c.l.b16 %v162
    %v186 = vunpack.c.l.b16 %v163
    %v187 = vunpack.c.l.b16 %v164
    %v188 = vunpack.c.l.b16 %v165
    %v189 = vunpack.c.l.b16 %v166
    %v190 = vunpack.c.l.b16 %v167
    %v191 = vunpack.c.l.b16 %v168
    %v192 = vpack.c.b16 %v185, %v184
    %v193 = vpack.c.b16 %v187, %v186
    %v194 = vpack.c.b16 %v189, %v188
    %v195 = vpack.c.b16 %v191, %v190
    %vm200 = vcmask 523264
    %v202 = vsel %vm200, %v160, 0
    %204 = vmatprep.subr.bf16.mxu0 0
    %205 = vmatpush1.bf16.msra.mxu0 0
    %206 = vmatprep.subr.bf16.mxu0 0
    %207 = vmatpush1.bf16.msra.mxu0 0
    %208 = vmatprep.subr.bf16.mxu0 0
    %209 = vmatpush1.bf16.msra.mxu0 0
    %210 = vmatprep.subr.bf16.mxu0 0
    %211 = vmatpush1.bf16.msra.mxu0 0
    %212 = vmatprep.subr.bf16.mxu0 0
    %213 = vmatpush1.bf16.msra.mxu0 %v195
    %214 = vmatprep.subr.bf16.mxu0 0
    %215 = vmatpush1.bf16.msra.mxu0 %v194
    %216 = vmatprep.subr.bf16.mxu0 0
    %217 = vmatpush1.bf16.msra.mxu0 %v193
    %218 = vmatprep.subr.bf16.mxu0 0
    %219 = vmatpush1.bf16.msra.mxu0 %v192
    %220 = vmatprep.subr.bf16.mxu0 0
    %221 = vmatpush2.bf16.msra.mxu0 0
    %222 = vmatprep.subr.bf16.mxu0 0
    %223 = vmatpush2.bf16.msra.mxu0 0
    %224 = vmatprep.subr.bf16.mxu0 0
    %225 = vmatpush2.bf16.msra.mxu0 0
    %226 = vmatprep.subr.bf16.mxu0 0
    %227 = vmatpush2.bf16.msra.mxu0 0
    %228 = vmatprep.subr.bf16.mxu0 0
    %229 = vmatpush2.bf16.msra.mxu0 0
    %230 = vmatprep.subr.bf16.mxu0 0
    %231 = vmatpush2.bf16.msra.mxu0 0
    %232 = vmatprep.subr.bf16.mxu0 0
    %233 = vmatpush2.bf16.msra.mxu0 0
    %234 = vmatprep.subr.bf16.mxu0 0
    %235 = vmatpush2.bf16.msra.mxu0 0
    %236 = vmatprep.mubr.bf16.mxu0 0
    %237 = vmatmul.mubr.bf16.gmra.mxu0 %v202
    %v238 = vpop.f32.mrf.mxu0
    %v239 = vadd.f32 %v174, %v238
    %v240 = vpop.f32.mrf.mxu0
    %v241 = vpop.f32.mrf.mxu0
    %v242 = vadd.f32 %v174, %v241
    %v243 = vpop.f32.mrf.mxu0
    %244 = vdwg.mxu0
    %v245 = vmax.f32 %v239, 0.0
    %v246 = vmax.f32 %v242, 0.0
    %v247 = vpack.c.bf16 %v246, %v245
    %v248 = vld [vmem:[#allocation8] sm:$0xf]
    %v249 = vld [vmem:[#allocation8 + $0x4] sm:$0xf]
    %v250 = vld [vmem:[#allocation8 + $0x8] sm:$0xf]
    %v251 = vld [vmem:[#allocation8 + $0xc] sm:$0xf]
    %v252 = vld [vmem:[#allocation8 + $0x10] sm:$0xf]
    %v253 = vld [vmem:[#allocation8 + $0x14] sm:$0xf]
    %v254 = vld [vmem:[#allocation8 + $0x18] sm:$0xf]
    %v255 = vld [vmem:[#allocation8 + $0x1c] sm:$0xf]
    %v256 = vld [vmem:[%s6] sm:$0x1]
    %v258 = vlaneseq
    %v259 = vshrl.u32 %v258, 7
    %v260 = vsub.s32 0, %v259
    %v261 = vrot.slane %v256, %v260
    %v271 = vunpack.c.l.b16 %v248
    %v272 = vunpack.c.l.b16 %v249
    %v273 = vunpack.c.l.b16 %v250
    %v274 = vunpack.c.l.b16 %v251
    %v275 = vunpack.c.l.b16 %v252
    %v276 = vunpack.c.l.b16 %v253
    %v277 = vunpack.c.l.b16 %v254
    %v278 = vunpack.c.l.b16 %v255
    %v279 = vpack.c.b16 %v272, %v271
    %v280 = vpack.c.b16 %v274, %v273
    %v281 = vpack.c.b16 %v276, %v275
    %v282 = vpack.c.b16 %v278, %v277
    %v288 = vsel %vm200, %v247, 0
    %290 = vmatprep.subr.bf16.mxu0 0
    %291 = vmatpush1.bf16.msra.mxu0 0
    %292 = vmatprep.subr.bf16.mxu0 0
    %293 = vmatpush1.bf16.msra.mxu0 0
    %294 = vmatprep.subr.bf16.mxu0 0
    %295 = vmatpush1.bf16.msra.mxu0 0
    %296 = vmatprep.subr.bf16.mxu0 0
    %297 = vmatpush1.bf16.msra.mxu0 0
    %298 = vmatprep.subr.bf16.mxu0 0
    %299 = vmatpush1.bf16.msra.mxu0 %v282
    %300 = vmatprep.subr.bf16.mxu0 0
    %301 = vmatpush1.bf16.msra.mxu0 %v281
    %302 = vmatprep.subr.bf16.mxu0 0
    %303 = vmatpush1.bf16.msra.mxu0 %v280
    %304 = vmatprep.subr.bf16.mxu0 0
    %305 = vmatpush1.bf16.msra.mxu0 %v279
    %306 = vmatprep.subr.bf16.mxu0 0
    %307 = vmatpush2.bf16.msra.mxu0 0
    %308 = vmatprep.subr.bf16.mxu0 0
    %309 = vmatpush2.bf16.msra.mxu0 0
    %310 = vmatprep.subr.bf16.mxu0 0
    %311 = vmatpush2.bf16.msra.mxu0 0
    %312 = vmatprep.subr.bf16.mxu0 0
    %313 = vmatpush2.bf16.msra.mxu0 0
    %314 = vmatprep.subr.bf16.mxu0 0
    %315 = vmatpush2.bf16.msra.mxu0 0
    %316 = vmatprep.subr.bf16.mxu0 0
    %317 = vmatpush2.bf16.msra.mxu0 0
    %318 = vmatprep.subr.bf16.mxu0 0
    %319 = vmatpush2.bf16.msra.mxu0 0
    %320 = vmatprep.subr.bf16.mxu0 0
    %321 = vmatpush2.bf16.msra.mxu0 0
    %322 = vmatprep.mubr.bf16.mxu0 0
    %323 = vmatmul.mubr.bf16.gmra.mxu0 %v288
    %v324 = vpop.f32.mrf.mxu0
    %v325 = vadd.f32 %v261, %v324
    %v326 = vpop.f32.mrf.mxu0
    %v327 = vpop.f32.mrf.mxu0
    %v328 = vadd.f32 %v261, %v327
    %v329 = vpop.f32.mrf.mxu0
    %330 = vdwg.mxu0
    %331 = vmax.xlane.f32.xlu0 %v325
    %v332 = vpop.xlane.xlu0 %331
    %333 = vmax.xlane.f32.xlu0 %v328
    %v334 = vpop.xlane.xlu0 %333
    %v335 = vsub.f32 %v325, %v332
    %v336 = vsub.f32 %v328, %v334
    %v337 = vmul.f32 %v335, 1.442695
    %v338 = vpow.pop %v337
    %v339 = vmul.f32 %v336, 1.442695
    %v340 = vpow.pop %v339
    %341 = vadd.xlane.f32.xlu0 %v338
    %v342 = vpop.xlane.xlu0 %341
    %343 = vadd.xlane.f32.xlu0 %v340
    %v344 = vpop.xlane.xlu0 %343
    %v345 = vlog2.pop %v342
    %v346 = vmul.f32 %v345, 0.6931472
    %v347 = vlog2.pop %v344
    %v348 = vmul.f32 %v347, 0.6931472
    %v349 = vsub.f32 %v335, %v346
    %v350 = vsub.f32 %v336, %v348
    %351 = vst [vmem:[#allocation10] sm:$0xff] %v349
    %352 = vst [vmem:[#allocation10 + $0x8] sm:$0xff] %v350
    // Predicated region
    $region46: #{tpu_custom_call.1} parent=1 // pred_check
      _
    $region47: #{tpu_custom_call.1} parent=1 // pred_check_branch
      %354 = sbr.rel (0) target = $region49
    $region48: #{tpu_custom_call.1} parent=1 // pred_region
      %s356 = ssub.s32 256, 256
      %357 = vsyncadd [#allocation4], %s356
      %s358 = sshll.u32 [#allocation10], 4
      %s359 = int_to_ptr.vmem [resolvable:$true] %s358
      %364 = dma.vmem_to_hbm [thread:$0]  %s359, 256, %s7, [#allocation4], 128, 128, 8
    $region49: #{tpu_custom_call.1} parent=1 // pred_fallthru
      _
    // Predicated region
    $region50: #{tpu_custom_call.1} parent=1 // pred_check
      _
    $region51: #{tpu_custom_call.1} parent=1 // pred_check_branch
      %366 = sbr.rel (0) target = $region53
    $region52: #{tpu_custom_call.1} parent=1 // pred_region
      %367 = dma.done [#allocation4], 256
    $region53: #{tpu_custom_call.1} parent=1 // pred_fallthru
      _
    %368 = vsyncpa [#allocation3], 1
    %369 = vsyncpa [#allocation6], 1
    %370 = vsyncpa [#allocation9], 1
    %371 = vsyncpa [#allocation4], 1

</llo_original>
